<compile_context>
chip_gen: v7x
topology: tpu7x:2x2x1
jax: 0.10.0
libtpu: 0.0.40
codegen_flags: <defaults>
</compile_context>

<pallas_src>
import functools

import jax
import jax.numpy as jnp
from jax import lax
from jax.experimental import pallas as pl
from jax.experimental.pallas import tpu as pltpu


def _cdiv(a, b):
    return -(-a // b)


def _round_up(a, b):
    return _cdiv(a, b) * b


def sampling_grid(size):
    """JAX port of the torch sampling_grid buffer: (1, 3, D, H, W) float32."""
    vecs = [jnp.arange(s, dtype=jnp.float32) for s in size]
    mesh = jnp.meshgrid(*vecs, indexing="ij")
    return jnp.stack(mesh)[None]


def _roll(x, shift, axis):
    """pltpu.roll with a canonicalized non-negative static shift."""
    n = x.shape[axis]
    s = shift % n
    if s == 0:
        return x
    return pltpu.roll(x, s, axis)


def _edge_weights(H, W):
    """Per-lane blend weights for gradients along the flattened H*W lane axis.

    grad = wa * (f[i+1] - f[i]) + wb * (f[i] - f[i-1]) reproduces
    torch.gradient: (0.5, 0.5) interior, (1, 0) low edge, (0, 1) high edge;
    the zero weight also kills the wrapped roll value.
    Returns (4, H*W) float32: rows = [wa_W, wb_W, wa_H, wb_H].
    (Kept as a tiny operand: its index_map is constant so it is DMA'd once.)
    """
    idx = jnp.arange(H * W, dtype=jnp.int32)
    w = idx % W
    h = idx // W

    def ab(i, n):
        a = jnp.where(i == n - 1, 0.0, jnp.where(i == 0, 1.0, 0.5))
        b = jnp.where(i == 0, 0.0, jnp.where(i == n - 1, 1.0, 0.5))
        return a, b

    aw, bw = ab(w, W)
    ah, bh = ab(h, H)
    return jnp.stack([aw, bw, ah, bh]).astype(jnp.float32)


def _vmem_budget():
    """(pipeline working-set budget, vmem_limit_bytes), generation aware.

    v5e/v6e (128 MiB physical VMEM) -> ~36 MiB working-set budget;
    v7x (64 MiB per TC)             -> ~25 MiB, leaving headroom for Mosaic
    scratch.  vmem_limit_bytes is set explicitly so v5e's 16 MiB default
    scoped limit never bites.
    """
    try:
        cap = int(pltpu.get_tpu_info().vmem_capacity_bytes)
    except Exception:  # no info available: assume the smallest (v7x per-TC)
        cap = 64 << 20
    budget = min(int(cap * 0.40), 36 << 20)
    vmem_limit = min(int(cap * 0.75), budget + (16 << 20))
    return budget, int(vmem_limit)


def _step_bytes(tD, HW, in_item, out_item):
    """Per-grid-step VMEM footprint: double-buffered input/output/halo blocks,
    the edge-weight operand, plus ~3 tile-sized f32 elementwise temporaries
    (f32 cast of the tile + live roll/fwd/bwd results)."""
    in_blk = tD * HW * in_item
    out_blk = 3 * tD * HW * out_item
    halo = 8 * HW * in_item          # (2, HW) halo block, sublane-padded to 8
    ew = 8 * HW * 4
    temps = 3 * tD * HW * 4
    return 2 * (in_blk + out_blk + halo) + ew + temps


def _pick_tiling(C, D, HW, in_item, out_item, budget):
    """Pick (tile_d, num_d_tiles): biggest roofline-friendly tile under the
    VMEM budget, balanced across tiles, and nudged for 2-TC load balance."""
    max_nd = max(_cdiv(D, 8), 1)

    # 1) single full-depth block when it fits (no halos, no padding).
    if D < 16 or _step_bytes(D, HW, in_item, out_item) <= budget:
        tD, nD = D, 1
    else:
        # 2) largest multiple-of-8 tile under budget, then balance tile sizes
        #    so the padded depth is minimal.
        tD = 8  # floor; if even this exceeds the budget there is no better
        # option without H*W tiling.  TODO(synk): tile H*W for huge planes.
        t = _round_up(D, 8)
        while t >= 16:
            if _step_bytes(t, HW, in_item, out_item) <= budget:
                tD = t
                break
            t -= 8
        nD = _cdiv(D, tD)
        tD = _round_up(_cdiv(D, nD), 8)
        nD = _cdiv(D, tD)

    # 3) megacore (v7x has 2 TensorCores): prefer an even total step count >= 4.
    if nD < max_nd and ((C * nD) % 2 == 1 or C * nD < 4):
        for cand in range(nD + 1, max_nd + 1):
            t = _round_up(_cdiv(D, cand), 8)
            n = _cdiv(D, t)
            if n <= nD:
                continue
            if (C * n) % 2 == 0 and C * n >= 4 and \
                    _step_bytes(t, HW, in_item, out_item) <= budget:
                tD, nD = t, n
                break
    return tD, nD


def _jac_kernel(*refs, W, tD, nD):
    """Gradients (D, H, W order) of one (tD, H*W) slab of one deformation
    channel.  The identity-grid contribution is added analytically: +1.0 on
    the plane whose diff-axis matches the channel component (c % 3)."""
    if nD > 1:
        d_ref, ew_ref, halo_ref, out_ref = refs
    else:
        d_ref, ew_ref, out_ref = refs
        halo_ref = None

    c = pl.program_id(0)                 # channel index (= batch*3 + component)
    k = pl.program_id(1)                 # D-tile index
    comp = lax.rem(c, 3)
    f32 = jnp.float32
    diag_d = (comp == 0).astype(f32)
    diag_h = (comp == 1).astype(f32)
    diag_w = (comp == 2).astype(f32)

    f = d_ref[...].astype(f32)           # cast on the VMEM tile (no HBM pass)
    odt = out_ref.dtype

    wa_w = ew_ref[0:1, :]                # (1, H*W) blend weights
    wb_w = ew_ref[1:2, :]
    wa_h = ew_ref[2:3, :]
    wb_h = ew_ref[3:4, :]

    # ---- W-axis gradient: lane roll by +-1 on the flattened H*W axis -------
    fwd = _roll(f, -1, 1) - f            # wrap value killed by the 0 weight
    bwd = f - _roll(f, 1, 1)
    out_ref[2, :, :] = (wa_w * fwd + wb_w * bwd + diag_w).astype(odt)

    # ---- H-axis gradient: lane roll by +-W on the flattened H*W axis -------
    fwd = _roll(f, -W, 1) - f
    bwd = f - _roll(f, W, 1)
    out_ref[1, :, :] = (wa_h * fwd + wb_h * bwd + diag_h).astype(odt)

    # ---- D-axis gradient: central diff everywhere, then overwrite the two
    # ---- edge rows (no iota / full-tile selects).
    out_ref[0, :, :] = (0.5 * (_roll(f, -1, 0) - _roll(f, 1, 0))
                        + diag_d).astype(odt)
    if halo_ref is not None:
        prev_plane = halo_ref[0:1, :].astype(f32)   # plane k*tD - 1   (k > 0)
        next_plane = halo_ref[1:2, :].astype(f32)   # plane (k+1)*tD   (k < nD-1)
    else:
        prev_plane = f[0:1, :]                      # dummies: one-sided branch
        next_plane = f[tD - 1:tD, :]
    at_lo = k == 0
    at_hi = k == nD - 1
    lo = jnp.where(at_lo, f[0:1, :], prev_plane)
    hi = jnp.where(at_hi, f[tD - 1:tD, :], next_plane)
    s_lo = jnp.where(at_lo, f32(1.0), f32(0.5))
    s_hi = jnp.where(at_hi, f32(1.0), f32(0.5))
    out_ref[0, 0:1, :] = ((f[1:2, :] - lo) * s_lo + diag_d).astype(odt)
    out_ref[0, tD - 1:tD, :] = ((hi - f[tD - 2:tD - 1, :]) * s_hi
                                + diag_d).astype(odt)


def deformation_jacobian(d, *, tile_d=None, out_dtype=jnp.float32,
                         native_layout=False):
    """Forward pass of DeformationJacobian.

    d : (N, 3, D, H, W) displacement field (torch NCDHW convention), any float dtype
        (streamed in its native dtype; math is done in f32 on the tile).
    native_layout=False (default): returns J of shape (1, D, H, W, 3, N*3),
        exactly matching the torch module.
    native_layout=True: returns the kernel-native lane-dense (N*3, 3, D, H, W)
        result (J[c, a] = d(deformation_c)/d(axis a)) and skips the lane-sparse
        final permute (a pure extra HBM pass) — preferred for fused consumers.
    out_dtype: pass jnp.bfloat16 when tolerated — writes dominate this
        memory-bound kernel, so bf16 output cuts HBM traffic by ~1.5x.
    """
    N, three, D, H, W = d.shape
    assert three == 3, d.shape
    assert D >= 2 and H >= 2 and W >= 2, "gradient needs >= 2 samples per axis"
    C = N * 3
    HW = H * W

    d3 = d.reshape(C, D, HW)                 # contiguous (free) collapse, native dtype
    ew = _edge_weights(H, W)                 # (4, H*W) blend weights

    in_item = jnp.dtype(d.dtype).itemsize
    out_item = jnp.dtype(out_dtype).itemsize
    budget, vmem_limit = _vmem_budget()

    if tile_d is None:
        tD, nD = _pick_tiling(C, D, HW, in_item, out_item, budget)
    else:
        tD = int(tile_d)
        assert tD == D or tD % 8 == 0, "tile_d must be D or a multiple of 8"
        nD = _cdiv(D, tD)

    D_pad = tD * nD
    if D_pad > D:
        # Pad depth to a multiple of the tile.  The first padded plane is the
        # linear extrapolation 2*f[D-1] - f[D-2], so the kernel's central
        # difference at the last real plane reproduces torch.gradient's
        # one-sided edge exactly; all padded-plane outputs are discarded.
        # (Only awkward D pays this one extra input copy.)
        x0 = d3[:, D - 2:D - 1].astype(jnp.float32)
        x1 = d3[:, D - 1:D].astype(jnp.float32)
        tail = [(2.0 * x1 - x0).astype(d3.dtype)]
        if D_pad - D > 1:
            tail.append(jnp.zeros((C, D_pad - D - 1, HW), d3.dtype))
        d3p = jnp.concatenate([d3] + tail, axis=1)
    else:
        d3p = d3

    in_specs = [
        pl.BlockSpec((None, tD, HW), lambda c, k: (c, k, 0)),
        pl.BlockSpec((4, HW), lambda c, k: (0, 0)),   # constant index: one DMA
    ]
    operands = [d3p, ew]
    if nD > 1:
        # Compact halo: exactly the two depth-boundary planes each tile needs,
        # gathered once here (2/tD of the input) instead of streaming 8-plane
        # blocks of the input per grid step.
        prev_idx = jnp.clip(jnp.arange(nD) * tD - 1, 0, D_pad - 1)
        next_idx = jnp.clip((jnp.arange(nD) + 1) * tD, 0, D_pad - 1)
        halo = jnp.stack([jnp.take(d3p, prev_idx, axis=1),
                          jnp.take(d3p, next_idx, axis=1)], axis=2)  # (C,nD,2,HW)
        in_specs.append(pl.BlockSpec((None, None, 2, HW),
                                     lambda c, k: (c, k, 0, 0)))
        operands.append(halo)

    g = pl.pallas_call(
        functools.partial(_jac_kernel, W=W, tD=tD, nD=nD),
        out_shape=jax.ShapeDtypeStruct((C, 3, D_pad, HW), out_dtype),
        grid=(C, nD),
        in_specs=in_specs,
        out_specs=pl.BlockSpec((None, 3, tD, HW), lambda c, k: (c, 0, k, 0)),
        compiler_params=pltpu.CompilerParams(
            dimension_semantics=("parallel", "parallel"),
            vmem_limit_bytes=vmem_limit),
    )(*operands)

    g = g[:, :, :D, :].reshape(C, 3, D, H, W)
    if native_layout:
        return g
    # Torch-module layout (1, D, H, W, 3, C): a lane-sparse permute kept only
    # to preserve the module's return signature.
    # TODO(synk): fuse this permute into J's consumer (it is a pure extra HBM
    # pass into a C-wide minor dim); prefer native_layout=True downstream.
    return jnp.transpose(g, (2, 3, 4, 1, 0))[None]


if __name__ == "__main__":
    key = jax.random.PRNGKey(0)

    def reference(d, size):
        """Pure-JAX mirror of the torch forward (torch.gradient semantics)."""
        grid = sampling_grid(size)
        deformation = (grid + d.astype(jnp.float32)).reshape(-1, *size)
        gD, gH, gW = jnp.gradient(deformation, axis=(1, 2, 3))
        comps = [jnp.transpose(gg[None], (0, 2, 3, 4, 1)) for gg in (gD, gH, gW)]
        return jnp.stack(comps, axis=-2)

    # Case 1: default auto tiling (single D block for this size), f32 in/out.
    size = (16, 16, 16)
    N = 2
    d = jax.random.normal(key, (N, 3) + size, dtype=jnp.float32)
    J = jax.block_until_ready(deformation_jacobian(d))
    J_ref = reference(d, size)
    assert J.shape == (1,) + size + (3, 3 * N), J.shape
    assert jnp.allclose(J, J_ref, atol=1e-5, rtol=1e-5), \
        float(jnp.abs(J - J_ref).max())

    # Case 2: forced D-tiling (compact-halo path), grid = (6, 2).
    Jt = jax.block_until_ready(deformation_jacobian(d, tile_d=8))
    assert jnp.allclose(Jt, J_ref, atol=1e-5, rtol=1e-5), \
        float(jnp.abs(Jt - J_ref).max())

    # Case 3: kernel-native lane-dense layout (no final permute pass).
    Jn = jax.block_until_ready(deformation_jacobian(d, native_layout=True))
    assert jnp.allclose(jnp.transpose(Jn, (2, 3, 4, 1, 0))[None], J_ref,
                        atol=1e-5, rtol=1e-5)

    # Case 4: depth not a multiple of the tile -> padded-depth + halo path.
    size2 = (12, 8, 16)
    d2 = jax.random.normal(jax.random.PRNGKey(1), (1, 3) + size2,
                           dtype=jnp.float32)
    J2 = jax.block_until_ready(deformation_jacobian(d2, tile_d=8))
    assert jnp.allclose(J2, reference(d2, size2), atol=1e-5, rtol=1e-5)

    # Case 5: bf16 input (no wrapper upcast) with bf16 output.
    db = d.astype(jnp.bfloat16)
    Jb = jax.block_until_ready(deformation_jacobian(db, out_dtype=jnp.bfloat16))
    assert Jb.dtype == jnp.bfloat16
    assert jnp.allclose(Jb.astype(jnp.float32), reference(db, size),
                        atol=5e-2, rtol=5e-2)

    print("KERNEL_OK")
</pallas_src>

<mosaic_0001>
module attributes {stable_mosaic.version = 11 : i64} {
  func.func @_jac_kernel(%arg0: i32, %arg1: i32, %arg2: memref<1x16x256xf32, #tpu.memory_space<vmem>>, %arg3: memref<4x256xf32, #tpu.memory_space<vmem>>, %arg4: memref<1x3x16x256xf32, #tpu.memory_space<vmem>>) attributes {dimension_semantics = [#tpu.dimension_semantics<parallel>, #tpu.dimension_semantics<parallel>], iteration_bounds = array<i64: 6, 1>, scalar_prefetch = 0 : i64, scratch_operands = 0 : i64, tpu.core_type = #tpu.core_type<tc>, window_params = [{transform_indices = @transform_0, window_bounds = array<i64: 1, 16, 256>}, {pipeline_mode = #tpu.pipeline_mode<synchronous>, transform_indices = @transform_1, window_bounds = array<i64: 4, 256>}, {transform_indices = @transform_2, window_bounds = array<i64: 1, 3, 16, 256>}]} {
    %c3_i32 = arith.constant 3 : i32
    %0 = arith.remsi %arg0, %c3_i32 : i32
    %c0_i32 = arith.constant 0 : i32
    %1 = arith.cmpi eq, %0, %c0_i32 : i32
    %2 = arith.extui %1 : i1 to i32
    %3 = arith.sitofp %2 : i32 to f32
    %c1_i32 = arith.constant 1 : i32
    %4 = arith.cmpi eq, %0, %c1_i32 : i32
    %5 = arith.extui %4 : i1 to i32
    %6 = arith.sitofp %5 : i32 to f32
    %c2_i32 = arith.constant 2 : i32
    %7 = arith.cmpi eq, %0, %c2_i32 : i32
    %8 = arith.extui %7 : i1 to i32
    %9 = arith.sitofp %8 : i32 to f32
    %c0 = arith.constant 0 : index
    %c0_0 = arith.constant 0 : index
    %c0_1 = arith.constant 0 : index
    %10 = vector.load %arg2[%c0, %c0_0, %c0_1] : memref<1x16x256xf32, #tpu.memory_space<vmem>>, vector<1x16x256xf32>
    %11 = vector.shape_cast %10 : vector<1x16x256xf32> to vector<16x256xf32>
    %c0_2 = arith.constant 0 : index
    %c0_3 = arith.constant 0 : index
    %12 = vector.load %arg3[%c0_2, %c0_3] : memref<4x256xf32, #tpu.memory_space<vmem>>, vector<1x256xf32>
    %c1 = arith.constant 1 : index
    %c0_4 = arith.constant 0 : index
    %13 = vector.load %arg3[%c1, %c0_4] : memref<4x256xf32, #tpu.memory_space<vmem>>, vector<1x256xf32>
    %c2 = arith.constant 2 : index
    %c0_5 = arith.constant 0 : index
    %14 = vector.load %arg3[%c2, %c0_5] : memref<4x256xf32, #tpu.memory_space<vmem>>, vector<1x256xf32>
    %c3 = arith.constant 3 : index
    %c0_6 = arith.constant 0 : index
    %15 = vector.load %arg3[%c3, %c0_6] : memref<4x256xf32, #tpu.memory_space<vmem>>, vector<1x256xf32>
    %c255_i32 = arith.constant 255 : i32
    %16 = tpu.dynamic_rotate %11 by %c255_i32 dim 1 : vector<16x256xf32>, i32 -> vector<16x256xf32>
    %17 = arith.subf %16, %11 : vector<16x256xf32>
    %c1_i32_7 = arith.constant 1 : i32
    %18 = tpu.dynamic_rotate %11 by %c1_i32_7 dim 1 : vector<16x256xf32>, i32 -> vector<16x256xf32>
    %19 = arith.subf %11, %18 : vector<16x256xf32>
    %20 = vector.broadcast %12 : vector<1x256xf32> to vector<16x256xf32>
    %21 = arith.mulf %20, %17 : vector<16x256xf32>
    %22 = vector.broadcast %13 : vector<1x256xf32> to vector<16x256xf32>
    %23 = arith.mulf %22, %19 : vector<16x256xf32>
    %24 = arith.addf %21, %23 : vector<16x256xf32>
    %25 = vector.broadcast %9 : f32 to vector<16x256xf32>
    %26 = arith.addf %24, %25 : vector<16x256xf32>
    %c0_8 = arith.constant 0 : index
    %c2_9 = arith.constant 2 : index
    %c0_10 = arith.constant 0 : index
    %c0_11 = arith.constant 0 : index
    %27 = vector.load %arg4[%c0_8, %c2_9, %c0_10, %c0_11] : memref<1x3x16x256xf32, #tpu.memory_space<vmem>>, vector<1x1x16x256xf32>
    %28 = vector.shape_cast %27 : vector<1x1x16x256xf32> to vector<16x256xf32>
    %29 = vector.shape_cast %26 : vector<16x256xf32> to vector<1x1x16x256xf32>
    tpu.vector_store %arg4[%c0_8, %c2_9, %c0_10, %c0_11], %29 {strides = array<i32>} : memref<1x3x16x256xf32, #tpu.memory_space<vmem>>, vector<1x1x16x256xf32>,
    %c240_i32 = arith.constant 240 : i32
    %30 = tpu.dynamic_rotate %11 by %c240_i32 dim 1 : vector<16x256xf32>, i32 -> vector<16x256xf32>
    %31 = arith.subf %30, %11 : vector<16x256xf32>
    %c16_i32 = arith.constant 16 : i32
    %32 = tpu.dynamic_rotate %11 by %c16_i32 dim 1 : vector<16x256xf32>, i32 -> vector<16x256xf32>
    %33 = arith.subf %11, %32 : vector<16x256xf32>
    %34 = vector.broadcast %14 : vector<1x256xf32> to vector<16x256xf32>
    %35 = arith.mulf %34, %31 : vector<16x256xf32>
    %36 = vector.broadcast %15 : vector<1x256xf32> to vector<16x256xf32>
    %37 = arith.mulf %36, %33 : vector<16x256xf32>
    %38 = arith.addf %35, %37 : vector<16x256xf32>
    %39 = vector.broadcast %6 : f32 to vector<16x256xf32>
    %40 = arith.addf %38, %39 : vector<16x256xf32>
    %c0_12 = arith.constant 0 : index
    %c1_13 = arith.constant 1 : index
    %c0_14 = arith.constant 0 : index
    %c0_15 = arith.constant 0 : index
    %41 = vector.load %arg4[%c0_12, %c1_13, %c0_14, %c0_15] : memref<1x3x16x256xf32, #tpu.memory_space<vmem>>, vector<1x1x16x256xf32>
    %42 = vector.shape_cast %41 : vector<1x1x16x256xf32> to vector<16x256xf32>
    %43 = vector.shape_cast %40 : vector<16x256xf32> to vector<1x1x16x256xf32>
    tpu.vector_store %arg4[%c0_12, %c1_13, %c0_14, %c0_15], %43 {strides = array<i32>} : memref<1x3x16x256xf32, #tpu.memory_space<vmem>>, vector<1x1x16x256xf32>,
    %c15_i32 = arith.constant 15 : i32
    %44 = tpu.dynamic_rotate %11 by %c15_i32 dim 0 : vector<16x256xf32>, i32 -> vector<16x256xf32>
    %c1_i32_16 = arith.constant 1 : i32
    %45 = tpu.dynamic_rotate %11 by %c1_i32_16 dim 0 : vector<16x256xf32>, i32 -> vector<16x256xf32>
    %46 = arith.subf %44, %45 : vector<16x256xf32>
    %cst = arith.constant 5.000000e-01 : f32
    %47 = vector.broadcast %cst : f32 to vector<16x256xf32>
    %48 = arith.mulf %47, %46 : vector<16x256xf32>
    %49 = vector.broadcast %3 : f32 to vector<16x256xf32>
    %50 = arith.addf %48, %49 : vector<16x256xf32>
    %c0_17 = arith.constant 0 : index
    %c0_18 = arith.constant 0 : index
    %c0_19 = arith.constant 0 : index
    %c0_20 = arith.constant 0 : index
    %51 = vector.load %arg4[%c0_17, %c0_18, %c0_19, %c0_20] : memref<1x3x16x256xf32, #tpu.memory_space<vmem>>, vector<1x1x16x256xf32>
    %52 = vector.shape_cast %51 : vector<1x1x16x256xf32> to vector<16x256xf32>
    %53 = vector.shape_cast %50 : vector<16x256xf32> to vector<1x1x16x256xf32>
    tpu.vector_store %arg4[%c0_17, %c0_18, %c0_19, %c0_20], %53 {strides = array<i32>} : memref<1x3x16x256xf32, #tpu.memory_space<vmem>>, vector<1x1x16x256xf32>,
    %54 = vector.extract_strided_slice %11 {offsets = [0, 0], sizes = [1, 256], strides = [1, 1]} : vector<16x256xf32> to vector<1x256xf32>
    %55 = vector.extract_strided_slice %11 {offsets = [15, 0], sizes = [1, 256], strides = [1, 1]} : vector<16x256xf32> to vector<1x256xf32>
    %c0_i32_21 = arith.constant 0 : i32
    %56 = arith.cmpi eq, %arg1, %c0_i32_21 : i32
    %c0_i32_22 = arith.constant 0 : i32
    %57 = arith.cmpi eq, %arg1, %c0_i32_22 : i32
    %58 = vector.extract_strided_slice %11 {offsets = [0, 0], sizes = [1, 256], strides = [1, 1]} : vector<16x256xf32> to vector<1x256xf32>
    %59 = arith.select %56, %58, %54 : vector<1x256xf32>
    %60 = vector.extract_strided_slice %11 {offsets = [15, 0], sizes = [1, 256], strides = [1, 1]} : vector<16x256xf32> to vector<1x256xf32>
    %61 = arith.select %57, %60, %55 : vector<1x256xf32>
    %cst_23 = arith.constant 1.000000e+00 : f32
    %cst_24 = arith.constant 5.000000e-01 : f32
    %62 = arith.select %56, %cst_23, %cst_24 : f32
    %cst_25 = arith.constant 1.000000e+00 : f32
    %cst_26 = arith.constant 5.000000e-01 : f32
    %63 = arith.select %57, %cst_25, %cst_26 : f32
    %64 = vector.extract_strided_slice %11 {offsets = [1, 0], sizes = [1, 256], strides = [1, 1]} : vector<16x256xf32> to vector<1x256xf32>
    %65 = arith.subf %64, %59 : vector<1x256xf32>
    %66 = vector.broadcast %62 : f32 to vector<1x256xf32>
    %67 = arith.mulf %65, %66 : vector<1x256xf32>
    %68 = vector.broadcast %3 : f32 to vector<1x256xf32>
    %69 = arith.addf %67, %68 : vector<1x256xf32>
    %c0_27 = arith.constant 0 : index
    %c0_28 = arith.constant 0 : index
    %c0_29 = arith.constant 0 : index
    %c0_30 = arith.constant 0 : index
    %70 = vector.load %arg4[%c0_27, %c0_28, %c0_29, %c0_30] : memref<1x3x16x256xf32, #tpu.memory_space<vmem>>, vector<1x1x1x256xf32>
    %71 = vector.shape_cast %70 : vector<1x1x1x256xf32> to vector<1x256xf32>
    %72 = vector.shape_cast %69 : vector<1x256xf32> to vector<1x1x1x256xf32>
    tpu.vector_store %arg4[%c0_27, %c0_28, %c0_29, %c0_30], %72 {strides = array<i32>} : memref<1x3x16x256xf32, #tpu.memory_space<vmem>>, vector<1x1x1x256xf32>,
    %73 = vector.extract_strided_slice %11 {offsets = [14, 0], sizes = [1, 256], strides = [1, 1]} : vector<16x256xf32> to vector<1x256xf32>
    %74 = arith.subf %61, %73 : vector<1x256xf32>
    %75 = vector.broadcast %63 : f32 to vector<1x256xf32>
    %76 = arith.mulf %74, %75 : vector<1x256xf32>
    %77 = vector.broadcast %3 : f32 to vector<1x256xf32>
    %78 = arith.addf %76, %77 : vector<1x256xf32>
    %c0_31 = arith.constant 0 : index
    %c0_32 = arith.constant 0 : index
    %c15 = arith.constant 15 : index
    %c0_33 = arith.constant 0 : index
    %79 = vector.load %arg4[%c0_31, %c0_32, %c15, %c0_33] : memref<1x3x16x256xf32, #tpu.memory_space<vmem>>, vector<1x1x1x256xf32>
    %80 = vector.shape_cast %79 : vector<1x1x1x256xf32> to vector<1x256xf32>
    %81 = vector.shape_cast %78 : vector<1x256xf32> to vector<1x1x1x256xf32>
    tpu.vector_store %arg4[%c0_31, %c0_32, %c15, %c0_33], %81 {strides = array<i32>} : memref<1x3x16x256xf32, #tpu.memory_space<vmem>>, vector<1x1x1x256xf32>,
    return
  }
  func.func @transform_0(%arg0: i32, %arg1: i32) -> (i32, i32, i32) {
    %c0_i32 = arith.constant 0 : i32
    %c0_i32_0 = arith.constant 0 : i32
    return %arg0, %arg1, %c0_i32 : i32, i32, i32
  }
  func.func @transform_1(%arg0: i32, %arg1: i32) -> (i32, i32) {
    %c0_i32 = arith.constant 0 : i32
    %c0_i32_0 = arith.constant 0 : i32
    %c0_i32_1 = arith.constant 0 : i32
    return %c0_i32, %c0_i32_0 : i32, i32
  }
  func.func @transform_2(%arg0: i32, %arg1: i32) -> (i32, i32, i32, i32) {
    %c0_i32 = arith.constant 0 : i32
    %c0_i32_0 = arith.constant 0 : i32
    %c0_i32_1 = arith.constant 0 : i32
    return %arg0, %c0_i32, %arg1, %c0_i32_0 : i32, i32, i32, i32
  }
}

</mosaic_0001>

<llo_original>
// kernel: tpu_custom_call.1
$region0: #{tpu_custom_call.1}
  #allocation0 [shape = 'u32[]', space=smem, size = 0x4, offset = 0x4, fixed_abs, tag = 'smem constant byte address 0x4 - core index']
  #allocation1 [shape = 'u32[144,128]{1,0:T(1,128)}', space=vmem, size = 0x12000, scoped, tag = 'internal scratch']
  %s0 = inlined_call_operand.hbm [shape: f32[6,16,256], index: 0, kind: input, shape index: {}]
  %s1 = inlined_call_operand.hbm [shape: f32[4,256], index: 1, kind: input, shape index: {}]
  %s2 = inlined_call_operand.hbm [shape: f32[6,3,16,256], index: 2, kind: output, shape index: {}]
  %s3 = sld [smem:[#allocation0]]
  $region49: #{tpu_custom_call.1} parent=0
    _
  %s5 = ssub.s32 1, %s3
  %s6 = scalar_select 0, %s5, %s3
  $region1: #{tpu_custom_call.1} parent=0
    #allocation2 [shape = 'u8[32768]{0}', space=vmem, size = 0x8000, scoped, tag = 'input window, operand 0']
    #allocation3 [shape = 's32[2]{0}', space=sflag, size = 0x8, scoped, tag = 'scoped memory for tpu_custom_call.1']
    #allocation4 [shape = 's32[2]{0}', space=sflag, size = 0x8, scoped, tag = 'scoped memory for tpu_custom_call.1']
    #allocation5 [shape = 'u8[4096]{0}', space=vmem, size = 0x1000, scoped, tag = 'input window, operand 1, single buffered']
    #allocation6 [shape = 's32[1]{0}', space=sflag, size = 0x4, scoped, tag = 'scoped memory for tpu_custom_call.1']
    #allocation7 [shape = 'u8[98304]{0}', space=vmem, size = 0x18000, scoped, tag = 'output window, operand 0']
    %7 = vsyncpa [#allocation3], 0
    %s8 = scalar_lea.sflag [#allocation3], 1
    %9 = vsyncpa %s8, 0
    %10 = vsyncpa [#allocation6], 0
    %11 = vsyncpa [#allocation4], 0
    %s12 = scalar_lea.sflag [#allocation4], 1
    %13 = vsyncpa %s12, 0
    loop: start=0, step=1, limit=8
    $region2: #{tpu_custom_call.1} parent=1 // loop_pre_header
      _
    $region3: #{tpu_custom_call.1} parent=1 // loop_header
      %s15 = sphi 0, %s19
      %p16 = scmp.ge.s32.totalorder %s15, 8
      %s22 = sphi 0, %s34
      %s23 = sphi 0, %s30
      %s24 = sphi 0, %s22
      %s25 = sphi 0, %s23
      %s26 = sphi 0, %s24
      %s27 = sphi 0, %s25
      %s39 = sphi 0, %s41
      %s42 = sphi 0, %s39
      %s43 = sphi 0, %s42
      %s59 = sphi 0, %s43
      %s63 = sphi 0, %s63
      %s65 = sphi 0, %s63
      %s66 = sphi 0, %s65
      %s80 = sphi 0, %s66
      %s88 = sphi 0, %s90
      %s91 = sphi 0, %s88
      %s92 = sphi 0, %s91
      %s108 = sphi 0, %s92
    $region4: #{tpu_custom_call.1} parent=1 // loop_header_branch
      %18 = sbr.rel (%p16) target = $region8
    $region5: #{tpu_custom_call.1} parent=1 // loop_body
      %s20 = ssub.s32 %s15, 1
      %s21 = ssub.s32 %s15, 2
      %s28 = sadd.s32 1, %s23
      %p29 = scmp.ge.s32.totalorder %s28, 1
      %s30 = scalar_select %p29, 0, %s28
      %s31 = sadd.s32 1, %s22
      %s32 = scalar_select %p29, %s31, %s22
      %p33 = scmp.ge.s32.totalorder %s32, 6
      %s34 = scalar_select %p33, 0, %s32
      %s35 = ssub.s32 %s22, %s34
      %s36 = ssub.s32 %s23, %s30
      %s37 = sor.u32 %s35, %s36
      %p38 = scmp.eq.s32.totalorder %s37, 0
      %s40 = sadd.s32 %s39, 1
      %s41 = scalar_select %p38, %s39, %s40
      %p44 = pneg %p38
      %p45 = scmp.eq.s32.totalorder %s15, 5
      %p46 = por %p44, %p45
      %p47 = scmp.ne.s32.totalorder %s39, %s42
      %p48 = scmp.eq.s32.totalorder %s15, 0
      %p49 = por %p47, %p48
      %p50 = scmp.ne.s32.totalorder %s39, %s42
      %p51 = scmp.eq.s32.totalorder %s20, 5
      %p52 = por %p50, %p51
      %p53 = scmp.ne.s32.totalorder %s42, %s43
      %p54 = scmp.eq.s32.totalorder %s20, 0
      %p55 = por %p53, %p54
      %p56 = scmp.ne.s32.totalorder %s42, %s43
      %p57 = scmp.eq.s32.totalorder %s21, 5
      %p58 = por %p56, %p57
      %p60 = scmp.ne.s32.totalorder %s43, %s59
      %p61 = scmp.eq.s32.totalorder %s21, 0
      %p62 = por %p60, %p61
      %s64 = sadd.s32 %s63, 1
      %p67 = scmp.eq.s32.totalorder %s15, 5
      %p68 = scmp.ne.s32.totalorder %s63, %s65
      %p69 = scmp.eq.s32.totalorder %s15, 0
      %p70 = por %p68, %p69
      %p71 = scmp.ne.s32.totalorder %s63, %s65
      %p72 = scmp.eq.s32.totalorder %s20, 5
      %p73 = por %p71, %p72
      %p74 = scmp.ne.s32.totalorder %s65, %s66
      %p75 = scmp.eq.s32.totalorder %s20, 0
      %p76 = por %p74, %p75
      %p77 = scmp.ne.s32.totalorder %s65, %s66
      %p78 = scmp.eq.s32.totalorder %s21, 5
      %p79 = por %p77, %p78
      %p81 = scmp.ne.s32.totalorder %s66, %s80
      %p82 = scmp.eq.s32.totalorder %s21, 0
      %p83 = por %p81, %p82
      %s84 = ssub.s32 %s22, %s34
      %s85 = ssub.s32 %s23, %s30
      %s86 = sor.u32 %s84, %s85
      %p87 = scmp.eq.s32.totalorder %s86, 0
      %s89 = sadd.s32 %s88, 1
      %s90 = scalar_select %p87, %s88, %s89
      %p93 = pneg %p87
      %p94 = scmp.eq.s32.totalorder %s15, 5
      %p95 = por %p93, %p94
      %p96 = scmp.ne.s32.totalorder %s88, %s91
      %p97 = scmp.eq.s32.totalorder %s15, 0
      %p98 = por %p96, %p97
      %p99 = scmp.ne.s32.totalorder %s88, %s91
      %p100 = scmp.eq.s32.totalorder %s20, 5
      %p101 = por %p99, %p100
      %p102 = scmp.ne.s32.totalorder %s91, %s92
      %p103 = scmp.eq.s32.totalorder %s20, 0
      %p104 = por %p102, %p103
      %p105 = scmp.ne.s32.totalorder %s91, %s92
      %p106 = scmp.eq.s32.totalorder %s21, 5
      %p107 = por %p105, %p106
      %p109 = scmp.ne.s32.totalorder %s92, %s108
      %p110 = scmp.eq.s32.totalorder %s21, 0
      %p111 = por %p109, %p110
      %p112 = scmp.le.s32.totalorder 1, %s15
      %p113 = scmp.lt.s32.totalorder %s15, 7
      %p114 = pnand %p112, %p113
      %p115 = pneg %p114
      // Predicated region
      $region9: #{tpu_custom_call.1} parent=5 // pred_check
        _
      $region10: #{tpu_custom_call.1} parent=5 // pred_check_branch
        %117 = sbr.rel (%p114) target = $region12
      $region11: #{tpu_custom_call.1} parent=5 // pred_region
        %s118 = ssub.s32 %s15, 1
        // Predicated region
        $region13: #{tpu_custom_call.1} parent=11 // pred_check
          %p119 = pneg %p76
        $region14: #{tpu_custom_call.1} parent=11 // pred_check_branch
          %121 = sbr.rel (%p119) target = $region16
        $region15: #{tpu_custom_call.1} parent=11 // pred_region
          %s123 = ssub.s32 128, 128
          %124 = vsyncadd [#allocation6], %s123
          %s126 = sshll.u32 [#allocation5], 4
          %s127 = int_to_ptr.vmem [resolvable:$true] %s126
          %129 = dma.hbm_to_vmem [thread:$0]  %s1, 128, %s127, [#allocation6]
        $region16: #{tpu_custom_call.1} parent=11 // pred_fallthru
          _
      $region12: #{tpu_custom_call.1} parent=5 // pred_fallthru
        _
      %p130 = scmp.lt.s32.totalorder %s15, 6
      // Predicated region
      $region17: #{tpu_custom_call.1} parent=5 // pred_check
        %p131 = pneg %p130
      $region18: #{tpu_custom_call.1} parent=5 // pred_check_branch
        %133 = sbr.rel (%p131) target = $region20
      $region19: #{tpu_custom_call.1} parent=5 // pred_region
        // Predicated region
        $region21: #{tpu_custom_call.1} parent=19 // pred_check
          %p134 = pneg %p49
        $region22: #{tpu_custom_call.1} parent=19 // pred_check_branch
          %136 = sbr.rel (%p134) target = $region24
        $region23: #{tpu_custom_call.1} parent=19 // pred_region
          %s137 = sand.u32 %s39, 1
          %s138 = scalar_lea.sflag [#allocation3], %s137
          %s139 = sand.u32 %s39, 1
          %s140 = smul.addr %s139, 32
          %s141 = scalar_lea.vmem [#allocation2], %s140
          %s142 = smul.u32 2, %s23
          %s144 = ssub.s32 512, 512
          %145 = vsyncadd %s138, %s144
          %s146 = smul.addr %s142, 2
          %s147 = smul.addr %s22, 4
          %s148 = sadd.s32 %s146, %s147
          %s149 = smul.addr %s148, 128
          %s150 = scalar_lea.hbm %s0, %s149
          %s151 = sshll.u32 %s141, 4
          %s152 = int_to_ptr.vmem [resolvable:$true] %s151
          %157 = dma.hbm_to_vmem [thread:$0]  %s150, 512, %s152, %s138, 256, 256, 16
        $region24: #{tpu_custom_call.1} parent=19 // pred_fallthru
          _
      $region20: #{tpu_custom_call.1} parent=5 // pred_fallthru
        _
      %p158 = scmp.le.s32.totalorder 1, %s15
      %p159 = scmp.lt.s32.totalorder %s15, 7
      %p160 = pnand %p158, %p159
      %p161 = pneg %p160
      // Predicated region
      $region25: #{tpu_custom_call.1} parent=5 // pred_check
        _
      $region26: #{tpu_custom_call.1} parent=5 // pred_check_branch
        %163 = sbr.rel (%p160) target = $region28
      $region27: #{tpu_custom_call.1} parent=5 // pred_region
        %s164 = ssub.s32 %s15, 1
        %s165 = sand.u32 %s42, 1
        %s166 = scalar_lea.sflag [#allocation3], %s165
        %s167 = sand.u32 %s42, 1
        %s168 = smul.addr %s167, 32
        %s169 = scalar_lea.vmem [#allocation2], %s168
        // Predicated region
        $region29: #{tpu_custom_call.1} parent=27 // pred_check
          %p170 = pneg %p55
        $region30: #{tpu_custom_call.1} parent=27 // pred_check_branch
          %172 = sbr.rel (%p170) target = $region32
        $region31: #{tpu_custom_call.1} parent=27 // pred_region
          %173 = dma.done %s166, 512
        $region32: #{tpu_custom_call.1} parent=27 // pred_fallthru
          _
        // Predicated region
        $region33: #{tpu_custom_call.1} parent=27 // pred_check
          %p174 = pneg %p76
        $region34: #{tpu_custom_call.1} parent=27 // pred_check_branch
          %176 = sbr.rel (%p174) target = $region36
        $region35: #{tpu_custom_call.1} parent=27 // pred_region
          %177 = dma.done [#allocation6], 128
        $region36: #{tpu_custom_call.1} parent=27 // pred_fallthru
          _
        %s178 = sand.u32 %s42, 1
        %s179 = scalar_lea.sflag [#allocation3], %s178
        %s180 = sand.u32 %s42, 1
        %s181 = smul.addr %s180, 32
        %s182 = scalar_lea.vmem [#allocation2], %s181
        %p183 = pneg %p55
        %p184 = pneg %p52
        %p185 = pneg %p76
        %p186 = pneg %p73
        %p187 = pneg %p104
        %p188 = pneg %p101
        %s189 = sand.u32 %s91, 1
        %s190 = scalar_lea.sflag [#allocation4], %s189
        %s191 = sand.u32 %s91, 1
        %s192 = smul.addr %s191, 96
        %s193 = scalar_lea.vmem [#allocation7], %s192
        %s194 = smul.u32 2, %s25
        %s195 = smul.u32 2, %s25
        %p196 = scmp.lt.s32.totalorder %s24, 0
        %s197 = ssub.s32 0, %s24
        %s198 = scalar_select %p196, %s197, %s24
        %s199 = sdiv.u32.pop %s198, 3
        %s200 = srem.u32.pop %s198, 3
        %s201 = ssub.s32 0, %s200
        %s202 = scalar_select %p196, %s201, %s200
        %p203 = scmp.eq.s32.totalorder %s202, 0
        %s204 = scalar_select %p203, 1, 0
        %s205 = scvt.s32.f32 %s204
        %p206 = scmp.eq.s32.totalorder %s202, 1
        %s207 = scalar_select %p206, 1, 0
        %s208 = scvt.s32.f32 %s207
        %p209 = scmp.eq.s32.totalorder %s202, 2
        %s210 = scalar_select %p209, 1, 0
        %s211 = scvt.s32.f32 %s210
        %v212 = vld [vmem:[%s169] sm:$0xff]
        %v213 = vld [vmem:[%s169 + $0x8] sm:$0xff]
        %v214 = vld [vmem:[%s169 + $0x10] sm:$0xff]
        %v215 = vld [vmem:[%s169 + $0x18] sm:$0xff]
        %v216 = vld [vmem:[#allocation5] ss:$4 sm:$0x3]
        %s217 = scalar_lea.vmem [#allocation5], 1
        %v218 = vld [vmem:[%s217] ss:$4 sm:$0x3]
        %s219 = scalar_lea.vmem [#allocation5], 2
        %v220 = vld [vmem:[%s219] ss:$4 sm:$0x3]
        %s221 = scalar_lea.vmem [#allocation5], 3
        %v222 = vld [vmem:[%s221] ss:$4 sm:$0x3]
        %223 = vrot.lane.b32.xlu0 %v212, 127
        %v224 = vpop.permute.xlu0 %223
        %225 = vrot.lane.b32.xlu0 %v214, 127
        %v226 = vpop.permute.xlu0 %225
        %227 = vrot.lane.b32.xlu0 %v213, 127
        %v228 = vpop.permute.xlu0 %227
        %229 = vrot.lane.b32.xlu0 %v215, 127
        %v230 = vpop.permute.xlu0 %229
        %v231 = vlaneseq
        %v232 = vand.u32 %v231, 127
        %vm233 = vcmp.lt.s32.totalorder %v232, 127
        %v234 = vsel %vm233, %v224, %v228
        %v235 = vsel %vm233, %v226, %v230
        %v236 = vsel %vm233, %v228, %v224
        %v237 = vsel %vm233, %v230, %v226
        %v238 = vsub.f32 %v234, %v212
        %v239 = vsub.f32 %v236, %v213
        %v240 = vsub.f32 %v235, %v214
        %v241 = vsub.f32 %v237, %v215
        %242 = vrot.lane.b32.xlu0 %v212, 1
        %v243 = vpop.permute.xlu0 %242
        %244 = vrot.lane.b32.xlu0 %v214, 1
        %v245 = vpop.permute.xlu0 %244
        %246 = vrot.lane.b32.xlu0 %v213, 1
        %v247 = vpop.permute.xlu0 %246
        %248 = vrot.lane.b32.xlu0 %v215, 1
        %v249 = vpop.permute.xlu0 %248
        %vm250 = vcmp.lt.s32.totalorder %v232, 1
        %v251 = vsel %vm250, %v243, %v247
        %v252 = vsel %vm250, %v245, %v249
        %v253 = vsel %vm250, %v247, %v243
        %v254 = vsel %vm250, %v249, %v245
        %v255 = vsub.f32 %v212, %v253
        %v256 = vsub.f32 %v213, %v251
        %v257 = vsub.f32 %v214, %v254
        %v258 = vsub.f32 %v215, %v252
        %v260 = vlaneseq
        %v261 = vshrl.u32 %v260, 7
        %v262 = vsub.s32 0, %v261
        %v263 = vrot.slane %v216, %v262
        %v264 = vlaneseq
        %v265 = vshrl.u32 %v264, 7
        %v266 = vsub.s32 1, %v265
        %v267 = vrot.slane %v216, %v266
        %v270 = vmul.f32 %v263, %v238
        %v271 = vmul.f32 %v267, %v239
        %v272 = vmul.f32 %v263, %v240
        %v273 = vmul.f32 %v267, %v241
        %v275 = vlaneseq
        %v276 = vshrl.u32 %v275, 7
        %v277 = vsub.s32 0, %v276
        %v278 = vrot.slane %v218, %v277
        %v279 = vlaneseq
        %v280 = vshrl.u32 %v279, 7
        %v281 = vsub.s32 1, %v280
        %v282 = vrot.slane %v218, %v281
        %v285 = vmul.f32 %v278, %v255
        %v286 = vmul.f32 %v282, %v256
        %v287 = vmul.f32 %v278, %v257
        %v288 = vmul.f32 %v282, %v258
        %v289 = vadd.f32 %v270, %v285
        %v290 = vadd.f32 %v271, %v286
        %v291 = vadd.f32 %v272, %v287
        %v292 = vadd.f32 %v273, %v288
        %v293 = vstv %s211
        %v294 = vadd.f32 %v289, %v293
        %v295 = vadd.f32 %v290, %v293
        %v296 = vadd.f32 %v291, %v293
        %v297 = vadd.f32 %v292, %v293
        %s298 = scalar_lea.vmem %s193, 64 [#allocation7]
        %299 = vst [vmem:[%s298] sm:$0xff] %v294
        %300 = vst [vmem:[%s298 + $0x8] sm:$0xff] %v295
        %301 = vst [vmem:[%s298 + $0x10] sm:$0xff] %v296
        %302 = vst [vmem:[%s298 + $0x18] sm:$0xff] %v297
        %303 = vrot.lane.b32.xlu0 %v212, 112
        %v304 = vpop.permute.xlu0 %303
        %305 = vrot.lane.b32.xlu0 %v214, 112
        %v306 = vpop.permute.xlu0 %305
        %307 = vrot.lane.b32.xlu0 %v213, 112
        %v308 = vpop.permute.xlu0 %307
        %309 = vrot.lane.b32.xlu0 %v215, 112
        %v310 = vpop.permute.xlu0 %309
        %vm311 = vcmp.lt.s32.totalorder %v232, 112
        %v312 = vsel %vm311, %v304, %v308
        %v313 = vsel %vm311, %v306, %v310
        %v314 = vsel %vm311, %v308, %v304
        %v315 = vsel %vm311, %v310, %v306
        %v316 = vsub.f32 %v312, %v212
        %v317 = vsub.f32 %v314, %v213
        %v318 = vsub.f32 %v313, %v214
        %v319 = vsub.f32 %v315, %v215
        %320 = vrot.lane.b32.xlu0 %v212, 16
        %v321 = vpop.permute.xlu0 %320
        %322 = vrot.lane.b32.xlu0 %v214, 16
        %v323 = vpop.permute.xlu0 %322
        %324 = vrot.lane.b32.xlu0 %v213, 16
        %v325 = vpop.permute.xlu0 %324
        %326 = vrot.lane.b32.xlu0 %v215, 16
        %v327 = vpop.permute.xlu0 %326
        %vm328 = vcmp.lt.s32.totalorder %v232, 16
        %v329 = vsel %vm328, %v321, %v325
        %v330 = vsel %vm328, %v323, %v327
        %v331 = vsel %vm328, %v325, %v321
        %v332 = vsel %vm328, %v327, %v323
        %v333 = vsub.f32 %v212, %v331
        %v334 = vsub.f32 %v213, %v329
        %v335 = vsub.f32 %v214, %v332
        %v336 = vsub.f32 %v215, %v330
        %v338 = vlaneseq
        %v339 = vshrl.u32 %v338, 7
        %v340 = vsub.s32 0, %v339
        %v341 = vrot.slane %v220, %v340
        %v342 = vlaneseq
        %v343 = vshrl.u32 %v342, 7
        %v344 = vsub.s32 1, %v343
        %v345 = vrot.slane %v220, %v344
        %v348 = vmul.f32 %v341, %v316
        %v349 = vmul.f32 %v345, %v317
        %v350 = vmul.f32 %v341, %v318
        %v351 = vmul.f32 %v345, %v319
        %v353 = vlaneseq
        %v354 = vshrl.u32 %v353, 7
        %v355 = vsub.s32 0, %v354
        %v356 = vrot.slane %v222, %v355
        %v357 = vlaneseq
        %v358 = vshrl.u32 %v357, 7
        %v359 = vsub.s32 1, %v358
        %v360 = vrot.slane %v222, %v359
        %v363 = vmul.f32 %v356, %v333
        %v364 = vmul.f32 %v360, %v334
        %v365 = vmul.f32 %v356, %v335
        %v366 = vmul.f32 %v360, %v336
        %v367 = vadd.f32 %v348, %v363
        %v368 = vadd.f32 %v349, %v364
        %v369 = vadd.f32 %v350, %v365
        %v370 = vadd.f32 %v351, %v366
        %v371 = vstv %s208
        %v372 = vadd.f32 %v367, %v371
        %v373 = vadd.f32 %v368, %v371
        %v374 = vadd.f32 %v369, %v371
        %v375 = vadd.f32 %v370, %v371
        %s376 = scalar_lea.vmem %s193, 32 [#allocation7]
        %377 = vst [vmem:[%s376] sm:$0xff] %v372
        %378 = vst [vmem:[%s376 + $0x8] sm:$0xff] %v373
        %379 = vst [vmem:[%s376 + $0x10] sm:$0xff] %v374
        %380 = vst [vmem:[%s376 + $0x18] sm:$0xff] %v375
        %v381 = vrot.slane %v212, 1
        %v382 = vrot.slane %v213, 1
        %v383 = vrot.slane %v214, 1
        %v384 = vrot.slane %v215, 1
        %v385 = vlaneseq
        %v386 = vshrl.u32 %v385, 7
        %vm387 = vcmp.lt.s32.totalorder %v386, 7
        %v388 = vsel %vm387, %v381, %v383
        %v389 = vsel %vm387, %v382, %v384
        %v390 = vsel %vm387, %v383, %v381
        %v391 = vsel %vm387, %v384, %v382
        %v392 = vrot.slane %v212, 7
        %v393 = vrot.slane %v213, 7
        %v394 = vrot.slane %v214, 7
        %v395 = vrot.slane %v215, 7
        %vm396 = vcmp.lt.s32.totalorder %v386, 1
        %v397 = vsel %vm396, %v392, %v394
        %v398 = vsel %vm396, %v393, %v395
        %v399 = vsel %vm396, %v394, %v392
        %v400 = vsel %vm396, %v395, %v393
        %v401 = vsub.f32 %v388, %v399
        %v402 = vsub.f32 %v389, %v400
        %v403 = vsub.f32 %v390, %v397
        %v404 = vsub.f32 %v391, %v398
        %v405 = vmul.f32 %v401, 0.5
        %v406 = vmul.f32 %v402, 0.5
        %v407 = vmul.f32 %v403, 0.5
        %v408 = vmul.f32 %v404, 0.5
        %v409 = vstv %s205
        %v410 = vadd.f32 %v405, %v409
        %v411 = vadd.f32 %v406, %v409
        %v412 = vadd.f32 %v407, %v409
        %v413 = vadd.f32 %v408, %v409
        %414 = vst [vmem:[%s193] sm:$0xff] %v410
        %415 = vst [vmem:[%s193 + $0x8] sm:$0xff] %v411
        %416 = vst [vmem:[%s193 + $0x10] sm:$0xff] %v412
        %417 = vst [vmem:[%s193 + $0x18] sm:$0xff] %v413
        %p418 = scmp.eq.s32.totalorder %s25, 0
        %s419 = scalar_select %p418, 1.0, 0.5
        %v422 = vrot.slane %v212, 7
        %v423 = vrot.slane %v213, 7
        %v426 = vsub.f32 %v212, %v422
        %v427 = vsub.f32 %v213, %v423
        %v428 = vstv %s419
        %v429 = vmul.f32 %v426, %v428
        %v430 = vmul.f32 %v427, %v428
        %v431 = vadd.f32 %v429, %v409
        %v432 = vadd.f32 %v430, %v409
        %v435 = vcombine.low %v431, %v432
        %v437 = vunpack.c.l.s4 1966171168
        %v438 = vunpack.c.0.s8 %v437
        %v439 = vlaneseq
        %v440 = vshrl.u32 %v439, 7
        %v441 = vsub.s32 %v438, %v440
        %v442 = vrot.slane %v435, %v441
        %v443 = vcombine.high %v442, %v442
        %v445 = vunpack.c.l.s4 1966171168
        %v446 = vunpack.c.0.s8 %v445
        %v447 = vlaneseq
        %v448 = vshrl.u32 %v447, 7
        %v449 = vsub.s32 %v446, %v448
        %v450 = vrot.slane %v443, %v449
        %v452 = vlaneseq
        %vm453 = vcmp.ge.s32.totalorder %v452, 0
        %vm454 = vcmp.lt.s32.totalorder %v452, 256
        %vm455 = vmand %vm453, %vm454
        %456 = vst.msk [vmem:[%s193] ss:$8 sm:$0x3] %vm455, %v450
        %457 = vst.msk [vmem:[%s193] ss:$8 sm:$0x0] %vm455, %v450
        %v460 = vrot.slane %v214, 7
        %v461 = vrot.slane %v215, 7
        %v464 = vsub.f32 %v214, %v460
        %v465 = vsub.f32 %v215, %v461
        %v466 = vmul.f32 %v464, %v428
        %v467 = vmul.f32 %v465, %v428
        %v468 = vadd.f32 %v466, %v409
        %v469 = vadd.f32 %v467, %v409
        %v472 = vcombine.high %v468, %v469
        %v474 = vunpack.c.l.s4 1966171168
        %v475 = vunpack.c.0.s8 %v474
        %v476 = vlaneseq
        %v477 = vshrl.u32 %v476, 7
        %v478 = vsub.s32 %v475, %v477
        %v479 = vrot.slane %v472, %v478
        %v480 = vcombine.high %v479, %v479
        %v482 = vunpack.c.l.s4 1966171168
        %v483 = vunpack.c.0.s8 %v482
        %v484 = vlaneseq
        %v485 = vshrl.u32 %v484, 7
        %v486 = vsub.s32 %v483, %v485
        %v487 = vrot.slane %v480, %v486
        %v488 = vcombine.high %v487, %v487
        %s490 = scalar_lea.vmem %s193, 23 [#allocation7]
        %491 = vst.msk [vmem:[%s490] ss:$8 sm:$0x3] %vm455, %v488
        %492 = vst.msk [vmem:[%s490] ss:$8 sm:$0x0] %vm455, %v488
        %s493 = sand.u32 %s91, 1
        %s494 = scalar_lea.sflag [#allocation4], %s493
        %s495 = sand.u32 %s91, 1
        %s496 = smul.addr %s495, 96
        %s497 = scalar_lea.vmem [#allocation7], %s496
        // Predicated region
        $region37: #{tpu_custom_call.1} parent=27 // pred_check
          %p498 = pneg %p101
        $region38: #{tpu_custom_call.1} parent=27 // pred_check_branch
          %500 = sbr.rel (%p498) target = $region40
        $region39: #{tpu_custom_call.1} parent=27 // pred_region
          %s501 = smul.u32 2, %s25
          %s503 = ssub.s32 1536, 1536
          %504 = vsyncadd %s494, %s503
          %s505 = smul.addr %s501, 2
          %s506 = smul.addr %s24, 12
          %s507 = sadd.s32 %s505, %s506
          %s508 = smul.addr %s507, 128
          %s509 = scalar_lea.hbm %s2, %s508
          %s510 = sshll.u32 %s497, 4
          %s511 = int_to_ptr.vmem [resolvable:$true] %s510
          %516 = dma.vmem_to_hbm [thread:$0]  %s511, 1536, %s509, %s494, 256, 256, 16
        $region40: #{tpu_custom_call.1} parent=27 // pred_fallthru
          _
      $region28: #{tpu_custom_call.1} parent=5 // pred_fallthru
        _
      %p517 = scmp.le.s32.totalorder 2, %s15
      // Predicated region
      $region41: #{tpu_custom_call.1} parent=5 // pred_check
        %p518 = pneg %p517
      $region42: #{tpu_custom_call.1} parent=5 // pred_check_branch
        %520 = sbr.rel (%p518) target = $region44
      $region43: #{tpu_custom_call.1} parent=5 // pred_region
        %s521 = ssub.s32 %s15, 2
        // Predicated region
        $region45: #{tpu_custom_call.1} parent=43 // pred_check
          %p522 = pneg %p107
        $region46: #{tpu_custom_call.1} parent=43 // pred_check_branch
          %524 = sbr.rel (%p522) target = $region48
        $region47: #{tpu_custom_call.1} parent=43 // pred_region
          %s525 = sand.u32 %s92, 1
          %s526 = scalar_lea.sflag [#allocation4], %s525
          %s527 = sand.u32 %s92, 1
          %s528 = smul.addr %s527, 96
          %s529 = scalar_lea.vmem [#allocation7], %s528
          %530 = dma.done %s526, 1536
        $region48: #{tpu_custom_call.1} parent=43 // pred_fallthru
          _
      $region44: #{tpu_custom_call.1} parent=5 // pred_fallthru
        _
    $region6: #{tpu_custom_call.1} parent=1 // loop_footer
      %s19 = sadd.s32 1, %s15
    $region7: #{tpu_custom_call.1} parent=1 // loop_footer_branch
      %14 = sbr.rel target = $region3
    $region8: #{tpu_custom_call.1} parent=1 // loop_exit
      _
    %531 = vsyncpa [#allocation3], 1
    %s532 = scalar_lea.sflag [#allocation3], 1
    %533 = vsyncpa %s532, 1
    %534 = vsyncpa [#allocation6], 1
    %535 = vsyncpa [#allocation4], 1
    %s536 = scalar_lea.sflag [#allocation4], 1
    %537 = vsyncpa %s536, 1

</llo_original>
